<compile_context>
chip_gen: v7x
topology: tpu7x:2x2x1
jax: 0.10.0
libtpu: 0.0.40
codegen_flags: <defaults>
</compile_context>

<pallas_src>
from functools import partial

import jax
import jax.numpy as jnp
from jax.experimental import pallas as pl
from jax.experimental.pallas import tpu as pltpu

LANE = 128  # vreg lane count
SUB = 8     # f32 sublane count


def _round_up(x, m):
    return (x + m - 1) // m * m


def _reorder_gates(w):
    """Reorder PyTorch [i, f, g, o] gate blocks (leading axis = 4*H) to [i, f, o, g]."""
    i, f, g, o = jnp.split(w, 4, axis=0)
    return jnp.concatenate([i, f, o, g], axis=0)


def lstm_kernel(gx_ref, whh_ref, wlin_ref, blin_ref, out_ref):
    """gx_ref:   (S, BP, GP)  precomputed x @ W_ih^T + (b_ih + b_hh), time-major,
                              gates packed on one lane axis, order [i, f, o, g]
       whh_ref:  (H, GP)      recurrent weight W_hh^T, same gate order (K unpadded)
       wlin_ref: (H, OP)      output head weight W_lin^T (zero-padded to OP lanes)
       blin_ref: (1, OP)      output head bias (zero-padded)
       out_ref:  (BP, OP)     sigmoid(linear(h_last)), lane-dense
    """
    S, BP, _ = gx_ref.shape
    H = whh_ref.shape[0]

    whh = whh_ref[...]  # (H, GP) resident in VMEM, read once

    def step(t, carry):
        h, c = carry
        # (BP, H) @ (H, GP): unpadded K keeps the MXU fill on the critical path short.
        gates = gx_ref[t] + jnp.dot(h, whh, preferred_element_type=jnp.float32)
        sig = jax.nn.sigmoid(gates[:, :3 * H])   # i, f, o in one EUP push
        g_g = jnp.tanh(gates[:, 3 * H:4 * H])    # g in one EUP push
        i_g = sig[:, 0 * H:1 * H]
        f_g = sig[:, 1 * H:2 * H]
        o_g = sig[:, 2 * H:3 * H]
        c = f_g * c + i_g * g_g
        h = o_g * jnp.tanh(c)
        return (h, c)

    h0 = jnp.zeros((BP, H), jnp.float32)
    c0 = jnp.zeros((BP, H), jnp.float32)
    # Unrolled so the LLO scheduler can overlap EUP latency of step t with MXU /
    # addressing work of step t+1; capped to avoid code blowup / vreg spill at large S.
    unroll = True if S <= 32 else 8
    h, _ = jax.lax.fori_loop(0, S, step, (h0, c0), unroll=unroll)

    pred = jnp.dot(h, wlin_ref[...], preferred_element_type=jnp.float32) + blin_ref[...]
    out_ref[...] = jax.nn.sigmoid(pred)


def pack_lstm_params(w_ih, w_hh, b_ih, b_hh, w_lin, b_lin):
    """One-time repack of PyTorch-layout parameters into kernel layout (call at init)."""
    H = w_hh.shape[1]
    O = w_lin.shape[0]
    GP = _round_up(4 * H, LANE)   # packed gate axis (128 for H=32, no padding)
    OP = _round_up(O, LANE)       # lane-dense output stores
    f32 = jnp.float32

    wih_t = jnp.pad(_reorder_gates(w_ih.astype(f32)).T, ((0, 0), (0, GP - 4 * H)))  # (I, GP)
    whh_t = jnp.pad(_reorder_gates(w_hh.astype(f32)).T, ((0, 0), (0, GP - 4 * H)))  # (H, GP)
    bias = jnp.pad(_reorder_gates((b_ih + b_hh).astype(f32)), (0, GP - 4 * H))      # (GP,)
    wlin_t = jnp.pad(w_lin.astype(f32).T, ((0, 0), (0, OP - O)))                    # (H, OP)
    blin = jnp.pad(b_lin.astype(f32), (0, OP - O)).reshape(1, OP)                   # (1, OP)

    return dict(wih_t=wih_t, whh_t=whh_t, bias=bias, wlin_t=wlin_t, blin=blin,
                hidden=int(H), out_dim=int(O))


@partial(jax.jit, static_argnames=("hidden", "out_dim"))
def _lstm_forward(x, wih_t, whh_t, bias, wlin_t, blin, *, hidden, out_dim):
    B, S, I = x.shape
    H, O = hidden, out_dim
    GP = whh_t.shape[1]
    OP = wlin_t.shape[1]
    BP = _round_up(B, SUB)
    f32 = jnp.float32

    # Hoisted input projection: one dense matmul (off the sequential critical path),
    # time-major result with the fused bias folded in.
    x_p = jnp.pad(x.astype(f32), ((0, BP - B), (0, 0), (0, 0)))               # (BP, S, I)
    gates_x = jnp.einsum('bsi,ig->sbg', x_p, wih_t) + bias[None, None, :]     # (S, BP, GP)
    # TODO(synk): for large S, fuse this projection into the kernel (time-chunked,
    # double-buffered) to avoid the gates_x HBM round-trip; at S=8 it is 32 KiB.

    cost = pl.CostEstimate(
        flops=2 * S * BP * H * GP + 2 * BP * H * OP,
        transcendentals=S * BP * 5 * H + BP * OP,
        bytes_accessed=4 * (gates_x.size + whh_t.size + wlin_t.size + blin.size + BP * OP),
    )

    vmem = pltpu.MemorySpace.VMEM
    out = pl.pallas_call(
        lstm_kernel,
        out_shape=jax.ShapeDtypeStruct((BP, OP), f32),
        # Single invocation; gates_x + weights are fully VMEM-resident (<64 KiB here).
        # Scaling notes:
        #   * v7x (64 MiB VMEM): full gates_x residency breaks around S~4K at this BP;
        #     chunk the time axis (BlockSpec over S marked "arbitrary", h/c carried in
        #     VMEM scratch) and set pltpu.CompilerParams(vmem_limit_bytes=...) so the
        #     double-buffered chunk pair stays under ~24-28 MiB.
        #   * Large batch: add a leading batch-tile grid axis with
        #     dimension_semantics=("parallel", "arbitrary") so v7x's two TensorCores
        #     each run half the batch's recurrence (harmless on single-TC v5e/v6e).
        in_specs=[pl.BlockSpec(memory_space=vmem)] * 4,
        out_specs=pl.BlockSpec(memory_space=vmem),
        cost_estimate=cost,
    )(gates_x, whh_t, wlin_t, blin)

    return out[:B, :O]


def lstm_forward(x, packed):
    """x: (B, S, I). Returns (B, O) = sigmoid(linear(last LSTM hidden state))."""
    return _lstm_forward(x, packed["wih_t"], packed["whh_t"], packed["bias"],
                         packed["wlin_t"], packed["blin"],
                         hidden=packed["hidden"], out_dim=packed["out_dim"])


def lstm_ref(x, w_ih, w_hh, b_ih, b_hh, w_lin, b_lin):
    """Pure-JAX reference of the PyTorch module forward (eval mode, zero init state)."""
    B, S, I = x.shape
    H = w_hh.shape[1]
    h = jnp.zeros((B, H), jnp.float32)
    c = jnp.zeros((B, H), jnp.float32)

    def step(carry, x_t):
        h, c = carry
        gates = x_t @ w_ih.T + b_ih + h @ w_hh.T + b_hh
        i = jax.nn.sigmoid(gates[:, 0 * H:1 * H])
        f = jax.nn.sigmoid(gates[:, 1 * H:2 * H])
        g = jnp.tanh(gates[:, 2 * H:3 * H])
        o = jax.nn.sigmoid(gates[:, 3 * H:4 * H])
        c = f * c + i * g
        h = o * jnp.tanh(c)
        return (h, c), h

    (h, c), _ = jax.lax.scan(step, (h, c), jnp.swapaxes(x, 0, 1))
    pred = h @ w_lin.T + b_lin
    return jax.nn.sigmoid(pred)


if __name__ == "__main__":
    # Small shapes consistent with the module: input_size=1, output_size=1.
    B, S, I, H, O = 2, 8, 1, 32, 1

    key = jax.random.PRNGKey(0)
    ks = jax.random.split(key, 7)
    scale = 1.0 / jnp.sqrt(H)

    x = jax.random.normal(ks[0], (B, S, I), jnp.float32)
    w_ih = jax.random.uniform(ks[1], (4 * H, I), jnp.float32, -scale, scale)
    w_hh = jax.random.uniform(ks[2], (4 * H, H), jnp.float32, -scale, scale)
    b_ih = jax.random.uniform(ks[3], (4 * H,), jnp.float32, -scale, scale)
    b_hh = jax.random.uniform(ks[4], (4 * H,), jnp.float32, -scale, scale)
    w_lin = jax.random.uniform(ks[5], (O, H), jnp.float32, -scale, scale)
    b_lin = jax.random.uniform(ks[6], (O,), jnp.float32, -scale, scale)

    # nn.LSTM dropout is a no-op for num_layers=1 (and eval mode), so it is omitted.
    packed = pack_lstm_params(w_ih, w_hh, b_ih, b_hh, w_lin, b_lin)
    out = lstm_forward(x, packed)
    out = jax.block_until_ready(out)

    ref = lstm_ref(x, w_ih, w_hh, b_ih, b_hh, w_lin, b_lin)
    assert out.shape == (B, O)
    assert jnp.allclose(out, ref, atol=1e-4), (out, ref)

    print("KERNEL_OK")
</pallas_src>

<mosaic_0001>
module attributes {stable_mosaic.version = 11 : i64} {
  func.func @lstm_kernel(%arg0: memref<8x8x128xf32, #tpu.memory_space<vmem>>, %arg1: memref<32x128xf32, #tpu.memory_space<vmem>>, %arg2: memref<32x128xf32, #tpu.memory_space<vmem>>, %arg3: memref<1x128xf32, #tpu.memory_space<vmem>>, %arg4: memref<8x128xf32, #tpu.memory_space<vmem>>) attributes {dimension_semantics = [], scalar_prefetch = 0 : i64, scratch_operands = 0 : i64, tpu.core_type = #tpu.core_type<tc>} {
    %c0 = arith.constant 0 : index
    %c0_0 = arith.constant 0 : index
    %0 = vector.load %arg1[%c0, %c0_0] : memref<32x128xf32, #tpu.memory_space<vmem>>, vector<32x128xf32>
    %cst = arith.constant 0.000000e+00 : f32
    %1 = vector.broadcast %cst : f32 to vector<8x32xf32>
    %cst_1 = arith.constant 0.000000e+00 : f32
    %2 = vector.broadcast %cst_1 : f32 to vector<8x32xf32>
    %c0_i32 = arith.constant 0 : i32
    %3 = arith.index_cast %c0_i32 : i32 to index
    %c0_2 = arith.constant 0 : index
    %c0_3 = arith.constant 0 : index
    %4 = vector.load %arg0[%3, %c0_2, %c0_3] : memref<8x8x128xf32, #tpu.memory_space<vmem>>, vector<1x8x128xf32>
    %5 = vector.shape_cast %4 : vector<1x8x128xf32> to vector<8x128xf32>
    %cst_4 = arith.constant dense<0.000000e+00> : vector<8x128xf32>
    %6 = tpu.matmul %1, %0, %cst_4 {dimension_numbers = #tpu.dot_dimension_numbers<[1], [0], [0], [1], [0, 0, 1, 1], [], []>} : vector<8x32xf32>, vector<32x128xf32>, vector<8x128xf32> -> vector<8x128xf32>
    %7 = arith.addf %5, %6 : vector<8x128xf32>
    %8 = vector.extract_strided_slice %7 {offsets = [0, 0], sizes = [8, 96], strides = [1, 1]} : vector<8x128xf32> to vector<8x96xf32>
    %9 = arith.negf %8 : vector<8x96xf32>
    %10 = math.exp %9 : vector<8x96xf32>
    %cst_5 = arith.constant 1.000000e+00 : f32
    %11 = vector.broadcast %cst_5 : f32 to vector<8x96xf32>
    %12 = arith.addf %11, %10 : vector<8x96xf32>
    %13 = arith.divf %11, %12 : vector<8x96xf32>
    %14 = vector.extract_strided_slice %7 {offsets = [0, 96], sizes = [8, 32], strides = [1, 1]} : vector<8x128xf32> to vector<8x32xf32>
    %15 = math.tanh %14 : vector<8x32xf32>
    %16 = vector.extract_strided_slice %13 {offsets = [0, 0], sizes = [8, 32], strides = [1, 1]} : vector<8x96xf32> to vector<8x32xf32>
    %17 = vector.extract_strided_slice %13 {offsets = [0, 32], sizes = [8, 32], strides = [1, 1]} : vector<8x96xf32> to vector<8x32xf32>
    %18 = vector.extract_strided_slice %13 {offsets = [0, 64], sizes = [8, 32], strides = [1, 1]} : vector<8x96xf32> to vector<8x32xf32>
    %19 = arith.mulf %17, %2 : vector<8x32xf32>
    %20 = arith.mulf %16, %15 : vector<8x32xf32>
    %21 = arith.addf %19, %20 : vector<8x32xf32>
    %22 = math.tanh %21 : vector<8x32xf32>
    %23 = arith.mulf %18, %22 : vector<8x32xf32>
    %c1_i32 = arith.constant 1 : i32
    %24 = arith.index_cast %c1_i32 : i32 to index
    %c0_6 = arith.constant 0 : index
    %c0_7 = arith.constant 0 : index
    %25 = vector.load %arg0[%24, %c0_6, %c0_7] : memref<8x8x128xf32, #tpu.memory_space<vmem>>, vector<1x8x128xf32>
    %26 = vector.shape_cast %25 : vector<1x8x128xf32> to vector<8x128xf32>
    %cst_8 = arith.constant dense<0.000000e+00> : vector<8x128xf32>
    %27 = tpu.matmul %23, %0, %cst_8 {dimension_numbers = #tpu.dot_dimension_numbers<[1], [0], [0], [1], [0, 0, 1, 1], [], []>} : vector<8x32xf32>, vector<32x128xf32>, vector<8x128xf32> -> vector<8x128xf32>
    %28 = arith.addf %26, %27 : vector<8x128xf32>
    %29 = vector.extract_strided_slice %28 {offsets = [0, 0], sizes = [8, 96], strides = [1, 1]} : vector<8x128xf32> to vector<8x96xf32>
    %30 = arith.negf %29 : vector<8x96xf32>
    %31 = math.exp %30 : vector<8x96xf32>
    %cst_9 = arith.constant 1.000000e+00 : f32
    %32 = vector.broadcast %cst_9 : f32 to vector<8x96xf32>
    %33 = arith.addf %32, %31 : vector<8x96xf32>
    %34 = arith.divf %32, %33 : vector<8x96xf32>
    %35 = vector.extract_strided_slice %28 {offsets = [0, 96], sizes = [8, 32], strides = [1, 1]} : vector<8x128xf32> to vector<8x32xf32>
    %36 = math.tanh %35 : vector<8x32xf32>
    %37 = vector.extract_strided_slice %34 {offsets = [0, 0], sizes = [8, 32], strides = [1, 1]} : vector<8x96xf32> to vector<8x32xf32>
    %38 = vector.extract_strided_slice %34 {offsets = [0, 32], sizes = [8, 32], strides = [1, 1]} : vector<8x96xf32> to vector<8x32xf32>
    %39 = vector.extract_strided_slice %34 {offsets = [0, 64], sizes = [8, 32], strides = [1, 1]} : vector<8x96xf32> to vector<8x32xf32>
    %40 = arith.mulf %38, %21 : vector<8x32xf32>
    %41 = arith.mulf %37, %36 : vector<8x32xf32>
    %42 = arith.addf %40, %41 : vector<8x32xf32>
    %43 = math.tanh %42 : vector<8x32xf32>
    %44 = arith.mulf %39, %43 : vector<8x32xf32>
    %c2_i32 = arith.constant 2 : i32
    %45 = arith.index_cast %c2_i32 : i32 to index
    %c0_10 = arith.constant 0 : index
    %c0_11 = arith.constant 0 : index
    %46 = vector.load %arg0[%45, %c0_10, %c0_11] : memref<8x8x128xf32, #tpu.memory_space<vmem>>, vector<1x8x128xf32>
    %47 = vector.shape_cast %46 : vector<1x8x128xf32> to vector<8x128xf32>
    %cst_12 = arith.constant dense<0.000000e+00> : vector<8x128xf32>
    %48 = tpu.matmul %44, %0, %cst_12 {dimension_numbers = #tpu.dot_dimension_numbers<[1], [0], [0], [1], [0, 0, 1, 1], [], []>} : vector<8x32xf32>, vector<32x128xf32>, vector<8x128xf32> -> vector<8x128xf32>
    %49 = arith.addf %47, %48 : vector<8x128xf32>
    %50 = vector.extract_strided_slice %49 {offsets = [0, 0], sizes = [8, 96], strides = [1, 1]} : vector<8x128xf32> to vector<8x96xf32>
    %51 = arith.negf %50 : vector<8x96xf32>
    %52 = math.exp %51 : vector<8x96xf32>
    %cst_13 = arith.constant 1.000000e+00 : f32
    %53 = vector.broadcast %cst_13 : f32 to vector<8x96xf32>
    %54 = arith.addf %53, %52 : vector<8x96xf32>
    %55 = arith.divf %53, %54 : vector<8x96xf32>
    %56 = vector.extract_strided_slice %49 {offsets = [0, 96], sizes = [8, 32], strides = [1, 1]} : vector<8x128xf32> to vector<8x32xf32>
    %57 = math.tanh %56 : vector<8x32xf32>
    %58 = vector.extract_strided_slice %55 {offsets = [0, 0], sizes = [8, 32], strides = [1, 1]} : vector<8x96xf32> to vector<8x32xf32>
    %59 = vector.extract_strided_slice %55 {offsets = [0, 32], sizes = [8, 32], strides = [1, 1]} : vector<8x96xf32> to vector<8x32xf32>
    %60 = vector.extract_strided_slice %55 {offsets = [0, 64], sizes = [8, 32], strides = [1, 1]} : vector<8x96xf32> to vector<8x32xf32>
    %61 = arith.mulf %59, %42 : vector<8x32xf32>
    %62 = arith.mulf %58, %57 : vector<8x32xf32>
    %63 = arith.addf %61, %62 : vector<8x32xf32>
    %64 = math.tanh %63 : vector<8x32xf32>
    %65 = arith.mulf %60, %64 : vector<8x32xf32>
    %c3_i32 = arith.constant 3 : i32
    %66 = arith.index_cast %c3_i32 : i32 to index
    %c0_14 = arith.constant 0 : index
    %c0_15 = arith.constant 0 : index
    %67 = vector.load %arg0[%66, %c0_14, %c0_15] : memref<8x8x128xf32, #tpu.memory_space<vmem>>, vector<1x8x128xf32>
    %68 = vector.shape_cast %67 : vector<1x8x128xf32> to vector<8x128xf32>
    %cst_16 = arith.constant dense<0.000000e+00> : vector<8x128xf32>
    %69 = tpu.matmul %65, %0, %cst_16 {dimension_numbers = #tpu.dot_dimension_numbers<[1], [0], [0], [1], [0, 0, 1, 1], [], []>} : vector<8x32xf32>, vector<32x128xf32>, vector<8x128xf32> -> vector<8x128xf32>
    %70 = arith.addf %68, %69 : vector<8x128xf32>
    %71 = vector.extract_strided_slice %70 {offsets = [0, 0], sizes = [8, 96], strides = [1, 1]} : vector<8x128xf32> to vector<8x96xf32>
    %72 = arith.negf %71 : vector<8x96xf32>
    %73 = math.exp %72 : vector<8x96xf32>
    %cst_17 = arith.constant 1.000000e+00 : f32
    %74 = vector.broadcast %cst_17 : f32 to vector<8x96xf32>
    %75 = arith.addf %74, %73 : vector<8x96xf32>
    %76 = arith.divf %74, %75 : vector<8x96xf32>
    %77 = vector.extract_strided_slice %70 {offsets = [0, 96], sizes = [8, 32], strides = [1, 1]} : vector<8x128xf32> to vector<8x32xf32>
    %78 = math.tanh %77 : vector<8x32xf32>
    %79 = vector.extract_strided_slice %76 {offsets = [0, 0], sizes = [8, 32], strides = [1, 1]} : vector<8x96xf32> to vector<8x32xf32>
    %80 = vector.extract_strided_slice %76 {offsets = [0, 32], sizes = [8, 32], strides = [1, 1]} : vector<8x96xf32> to vector<8x32xf32>
    %81 = vector.extract_strided_slice %76 {offsets = [0, 64], sizes = [8, 32], strides = [1, 1]} : vector<8x96xf32> to vector<8x32xf32>
    %82 = arith.mulf %80, %63 : vector<8x32xf32>
    %83 = arith.mulf %79, %78 : vector<8x32xf32>
    %84 = arith.addf %82, %83 : vector<8x32xf32>
    %85 = math.tanh %84 : vector<8x32xf32>
    %86 = arith.mulf %81, %85 : vector<8x32xf32>
    %c4_i32 = arith.constant 4 : i32
    %87 = arith.index_cast %c4_i32 : i32 to index
    %c0_18 = arith.constant 0 : index
    %c0_19 = arith.constant 0 : index
    %88 = vector.load %arg0[%87, %c0_18, %c0_19] : memref<8x8x128xf32, #tpu.memory_space<vmem>>, vector<1x8x128xf32>
    %89 = vector.shape_cast %88 : vector<1x8x128xf32> to vector<8x128xf32>
    %cst_20 = arith.constant dense<0.000000e+00> : vector<8x128xf32>
    %90 = tpu.matmul %86, %0, %cst_20 {dimension_numbers = #tpu.dot_dimension_numbers<[1], [0], [0], [1], [0, 0, 1, 1], [], []>} : vector<8x32xf32>, vector<32x128xf32>, vector<8x128xf32> -> vector<8x128xf32>
    %91 = arith.addf %89, %90 : vector<8x128xf32>
    %92 = vector.extract_strided_slice %91 {offsets = [0, 0], sizes = [8, 96], strides = [1, 1]} : vector<8x128xf32> to vector<8x96xf32>
    %93 = arith.negf %92 : vector<8x96xf32>
    %94 = math.exp %93 : vector<8x96xf32>
    %cst_21 = arith.constant 1.000000e+00 : f32
    %95 = vector.broadcast %cst_21 : f32 to vector<8x96xf32>
    %96 = arith.addf %95, %94 : vector<8x96xf32>
    %97 = arith.divf %95, %96 : vector<8x96xf32>
    %98 = vector.extract_strided_slice %91 {offsets = [0, 96], sizes = [8, 32], strides = [1, 1]} : vector<8x128xf32> to vector<8x32xf32>
    %99 = math.tanh %98 : vector<8x32xf32>
    %100 = vector.extract_strided_slice %97 {offsets = [0, 0], sizes = [8, 32], strides = [1, 1]} : vector<8x96xf32> to vector<8x32xf32>
    %101 = vector.extract_strided_slice %97 {offsets = [0, 32], sizes = [8, 32], strides = [1, 1]} : vector<8x96xf32> to vector<8x32xf32>
    %102 = vector.extract_strided_slice %97 {offsets = [0, 64], sizes = [8, 32], strides = [1, 1]} : vector<8x96xf32> to vector<8x32xf32>
    %103 = arith.mulf %101, %84 : vector<8x32xf32>
    %104 = arith.mulf %100, %99 : vector<8x32xf32>
    %105 = arith.addf %103, %104 : vector<8x32xf32>
    %106 = math.tanh %105 : vector<8x32xf32>
    %107 = arith.mulf %102, %106 : vector<8x32xf32>
    %c5_i32 = arith.constant 5 : i32
    %108 = arith.index_cast %c5_i32 : i32 to index
    %c0_22 = arith.constant 0 : index
    %c0_23 = arith.constant 0 : index
    %109 = vector.load %arg0[%108, %c0_22, %c0_23] : memref<8x8x128xf32, #tpu.memory_space<vmem>>, vector<1x8x128xf32>
    %110 = vector.shape_cast %109 : vector<1x8x128xf32> to vector<8x128xf32>
    %cst_24 = arith.constant dense<0.000000e+00> : vector<8x128xf32>
    %111 = tpu.matmul %107, %0, %cst_24 {dimension_numbers = #tpu.dot_dimension_numbers<[1], [0], [0], [1], [0, 0, 1, 1], [], []>} : vector<8x32xf32>, vector<32x128xf32>, vector<8x128xf32> -> vector<8x128xf32>
    %112 = arith.addf %110, %111 : vector<8x128xf32>
    %113 = vector.extract_strided_slice %112 {offsets = [0, 0], sizes = [8, 96], strides = [1, 1]} : vector<8x128xf32> to vector<8x96xf32>
    %114 = arith.negf %113 : vector<8x96xf32>
    %115 = math.exp %114 : vector<8x96xf32>
    %cst_25 = arith.constant 1.000000e+00 : f32
    %116 = vector.broadcast %cst_25 : f32 to vector<8x96xf32>
    %117 = arith.addf %116, %115 : vector<8x96xf32>
    %118 = arith.divf %116, %117 : vector<8x96xf32>
    %119 = vector.extract_strided_slice %112 {offsets = [0, 96], sizes = [8, 32], strides = [1, 1]} : vector<8x128xf32> to vector<8x32xf32>
    %120 = math.tanh %119 : vector<8x32xf32>
    %121 = vector.extract_strided_slice %118 {offsets = [0, 0], sizes = [8, 32], strides = [1, 1]} : vector<8x96xf32> to vector<8x32xf32>
    %122 = vector.extract_strided_slice %118 {offsets = [0, 32], sizes = [8, 32], strides = [1, 1]} : vector<8x96xf32> to vector<8x32xf32>
    %123 = vector.extract_strided_slice %118 {offsets = [0, 64], sizes = [8, 32], strides = [1, 1]} : vector<8x96xf32> to vector<8x32xf32>
    %124 = arith.mulf %122, %105 : vector<8x32xf32>
    %125 = arith.mulf %121, %120 : vector<8x32xf32>
    %126 = arith.addf %124, %125 : vector<8x32xf32>
    %127 = math.tanh %126 : vector<8x32xf32>
    %128 = arith.mulf %123, %127 : vector<8x32xf32>
    %c6_i32 = arith.constant 6 : i32
    %129 = arith.index_cast %c6_i32 : i32 to index
    %c0_26 = arith.constant 0 : index
    %c0_27 = arith.constant 0 : index
    %130 = vector.load %arg0[%129, %c0_26, %c0_27] : memref<8x8x128xf32, #tpu.memory_space<vmem>>, vector<1x8x128xf32>
    %131 = vector.shape_cast %130 : vector<1x8x128xf32> to vector<8x128xf32>
    %cst_28 = arith.constant dense<0.000000e+00> : vector<8x128xf32>
    %132 = tpu.matmul %128, %0, %cst_28 {dimension_numbers = #tpu.dot_dimension_numbers<[1], [0], [0], [1], [0, 0, 1, 1], [], []>} : vector<8x32xf32>, vector<32x128xf32>, vector<8x128xf32> -> vector<8x128xf32>
    %133 = arith.addf %131, %132 : vector<8x128xf32>
    %134 = vector.extract_strided_slice %133 {offsets = [0, 0], sizes = [8, 96], strides = [1, 1]} : vector<8x128xf32> to vector<8x96xf32>
    %135 = arith.negf %134 : vector<8x96xf32>
    %136 = math.exp %135 : vector<8x96xf32>
    %cst_29 = arith.constant 1.000000e+00 : f32
    %137 = vector.broadcast %cst_29 : f32 to vector<8x96xf32>
    %138 = arith.addf %137, %136 : vector<8x96xf32>
    %139 = arith.divf %137, %138 : vector<8x96xf32>
    %140 = vector.extract_strided_slice %133 {offsets = [0, 96], sizes = [8, 32], strides = [1, 1]} : vector<8x128xf32> to vector<8x32xf32>
    %141 = math.tanh %140 : vector<8x32xf32>
    %142 = vector.extract_strided_slice %139 {offsets = [0, 0], sizes = [8, 32], strides = [1, 1]} : vector<8x96xf32> to vector<8x32xf32>
    %143 = vector.extract_strided_slice %139 {offsets = [0, 32], sizes = [8, 32], strides = [1, 1]} : vector<8x96xf32> to vector<8x32xf32>
    %144 = vector.extract_strided_slice %139 {offsets = [0, 64], sizes = [8, 32], strides = [1, 1]} : vector<8x96xf32> to vector<8x32xf32>
    %145 = arith.mulf %143, %126 : vector<8x32xf32>
    %146 = arith.mulf %142, %141 : vector<8x32xf32>
    %147 = arith.addf %145, %146 : vector<8x32xf32>
    %148 = math.tanh %147 : vector<8x32xf32>
    %149 = arith.mulf %144, %148 : vector<8x32xf32>
    %c7_i32 = arith.constant 7 : i32
    %150 = arith.index_cast %c7_i32 : i32 to index
    %c0_30 = arith.constant 0 : index
    %c0_31 = arith.constant 0 : index
    %151 = vector.load %arg0[%150, %c0_30, %c0_31] : memref<8x8x128xf32, #tpu.memory_space<vmem>>, vector<1x8x128xf32>
    %152 = vector.shape_cast %151 : vector<1x8x128xf32> to vector<8x128xf32>
    %cst_32 = arith.constant dense<0.000000e+00> : vector<8x128xf32>
    %153 = tpu.matmul %149, %0, %cst_32 {dimension_numbers = #tpu.dot_dimension_numbers<[1], [0], [0], [1], [0, 0, 1, 1], [], []>} : vector<8x32xf32>, vector<32x128xf32>, vector<8x128xf32> -> vector<8x128xf32>
    %154 = arith.addf %152, %153 : vector<8x128xf32>
    %155 = vector.extract_strided_slice %154 {offsets = [0, 0], sizes = [8, 96], strides = [1, 1]} : vector<8x128xf32> to vector<8x96xf32>
    %156 = arith.negf %155 : vector<8x96xf32>
    %157 = math.exp %156 : vector<8x96xf32>
    %cst_33 = arith.constant 1.000000e+00 : f32
    %158 = vector.broadcast %cst_33 : f32 to vector<8x96xf32>
    %159 = arith.addf %158, %157 : vector<8x96xf32>
    %160 = arith.divf %158, %159 : vector<8x96xf32>
    %161 = vector.extract_strided_slice %154 {offsets = [0, 96], sizes = [8, 32], strides = [1, 1]} : vector<8x128xf32> to vector<8x32xf32>
    %162 = math.tanh %161 : vector<8x32xf32>
    %163 = vector.extract_strided_slice %160 {offsets = [0, 0], sizes = [8, 32], strides = [1, 1]} : vector<8x96xf32> to vector<8x32xf32>
    %164 = vector.extract_strided_slice %160 {offsets = [0, 32], sizes = [8, 32], strides = [1, 1]} : vector<8x96xf32> to vector<8x32xf32>
    %165 = vector.extract_strided_slice %160 {offsets = [0, 64], sizes = [8, 32], strides = [1, 1]} : vector<8x96xf32> to vector<8x32xf32>
    %166 = arith.mulf %164, %147 : vector<8x32xf32>
    %167 = arith.mulf %163, %162 : vector<8x32xf32>
    %168 = arith.addf %166, %167 : vector<8x32xf32>
    %169 = math.tanh %168 : vector<8x32xf32>
    %170 = arith.mulf %165, %169 : vector<8x32xf32>
    %c8_i32 = arith.constant 8 : i32
    %c0_34 = arith.constant 0 : index
    %c0_35 = arith.constant 0 : index
    %171 = vector.load %arg2[%c0_34, %c0_35] : memref<32x128xf32, #tpu.memory_space<vmem>>, vector<32x128xf32>
    %cst_36 = arith.constant dense<0.000000e+00> : vector<8x128xf32>
    %172 = tpu.matmul %170, %171, %cst_36 {dimension_numbers = #tpu.dot_dimension_numbers<[1], [0], [0], [1], [0, 0, 1, 1], [], []>} : vector<8x32xf32>, vector<32x128xf32>, vector<8x128xf32> -> vector<8x128xf32>
    %c0_37 = arith.constant 0 : index
    %c0_38 = arith.constant 0 : index
    %173 = vector.load %arg3[%c0_37, %c0_38] : memref<1x128xf32, #tpu.memory_space<vmem>>, vector<1x128xf32>
    %174 = vector.broadcast %173 : vector<1x128xf32> to vector<8x128xf32>
    %175 = arith.addf %172, %174 : vector<8x128xf32>
    %176 = arith.negf %175 : vector<8x128xf32>
    %177 = math.exp %176 : vector<8x128xf32>
    %cst_39 = arith.constant 1.000000e+00 : f32
    %178 = vector.broadcast %cst_39 : f32 to vector<8x128xf32>
    %179 = arith.addf %178, %177 : vector<8x128xf32>
    %180 = arith.divf %178, %179 : vector<8x128xf32>
    %c0_40 = arith.constant 0 : index
    %c0_41 = arith.constant 0 : index
    %181 = vector.load %arg4[%c0_40, %c0_41] : memref<8x128xf32, #tpu.memory_space<vmem>>, vector<8x128xf32>
    tpu.vector_store %arg4[%c0_40, %c0_41], %180 {strides = array<i32>} : memref<8x128xf32, #tpu.memory_space<vmem>>, vector<8x128xf32>,
    return
  }
}

</mosaic_0001>

<llo_original>
// kernel: _lstm_forward.1
$region0: #{_lstm_forward.1}
  #allocation0 [shape = 'u32[]', space=smem, size = 0x4, offset = 0x4, fixed_abs, tag = 'smem constant byte address 0x4 - core index']
  #allocation1 [shape = 'u32[144,128]{1,0:T(1,128)}', space=vmem, size = 0x12000, scoped, tag = 'internal scratch']
  %s0 = inlined_call_operand.vmem [shape: f32[8,8,128], index: 0, kind: input, shape index: {}]
  %s1 = inlined_call_operand.vmem [shape: f32[32,128], index: 1, kind: input, shape index: {}]
  %s2 = inlined_call_operand.vmem [shape: f32[32,128], index: 2, kind: input, shape index: {}]
  %s3 = inlined_call_operand.vmem [shape: f32[1,128], index: 3, kind: input, shape index: {}]
  %s4 = inlined_call_operand.vmem [shape: f32[8,128], index: 4, kind: output, shape index: {}]
  %s5 = sld [smem:[#allocation0]]
  $region26: #{_lstm_forward.1} parent=0
    _
  %s7 = ssub.s32 1, %s5
  %s8 = scalar_select 0, %s7, %s5
  // Predicated region
  $region2: #{_lstm_forward.1} parent=0 // pred_check
    _
  $region3: #{_lstm_forward.1} parent=0 // pred_check_branch
    %10 = sbr.rel (0) target = $region5
  $region4: #{_lstm_forward.1} parent=0 // pred_region
    _
  $region5: #{_lstm_forward.1} parent=0 // pred_fallthru
    _
  // Predicated region
  $region6: #{_lstm_forward.1} parent=0 // pred_check
    _
  $region7: #{_lstm_forward.1} parent=0 // pred_check_branch
    %12 = sbr.rel (0) target = $region9
  $region8: #{_lstm_forward.1} parent=0 // pred_region
    _
  $region9: #{_lstm_forward.1} parent=0 // pred_fallthru
    _
  // Predicated region
  $region10: #{_lstm_forward.1} parent=0 // pred_check
    _
  $region11: #{_lstm_forward.1} parent=0 // pred_check_branch
    %14 = sbr.rel (0) target = $region13
  $region12: #{_lstm_forward.1} parent=0 // pred_region
    _
  $region13: #{_lstm_forward.1} parent=0 // pred_fallthru
    _
  // Predicated region
  $region14: #{_lstm_forward.1} parent=0 // pred_check
    _
  $region15: #{_lstm_forward.1} parent=0 // pred_check_branch
    %16 = sbr.rel (0) target = $region17
  $region16: #{_lstm_forward.1} parent=0 // pred_region
    _
  $region17: #{_lstm_forward.1} parent=0 // pred_fallthru
    _
  %v17 = vld [vmem:[%s1] sm:$0xff]
  %v18 = vld [vmem:[%s1 + $0x8] sm:$0xff]
  %v19 = vld [vmem:[%s1 + $0x10] sm:$0xff]
  %v20 = vld [vmem:[%s1 + $0x18] sm:$0xff]
  %v21 = vld [vmem:[%s0] sm:$0xff]
  %vm22 = vcmask 261120
  %v24 = vsel %vm22, 0.0, 0
  %26 = vmatprep.subr.mxu0 0.0
  %27 = vmatpush1.msra.mxu0 %v17
  %28 = vmatprep.subr.mxu0 0.0
  %29 = vmatpush1.msra.mxu0 %v18
  %30 = vmatprep.subr.mxu0 0.0
  %31 = vmatpush1.msra.mxu0 %v19
  %32 = vmatprep.subr.mxu0 0.0
  %33 = vmatpush1.msra.mxu0 %v20
  %34 = vmatprep.subr.mxu0 0.0
  %35 = vmatpush1.msra.mxu0 0.0
  %36 = vmatprep.subr.mxu0 0.0
  %37 = vmatpush1.msra.mxu0 0.0
  %38 = vmatprep.subr.mxu0 0.0
  %39 = vmatpush1.msra.mxu0 0.0
  %40 = vmatprep.subr.mxu0 0.0
  %41 = vmatpush1.msra.mxu0 0.0
  %42 = vmatprep.subr.mxu0 0.0
  %43 = vmatpush1.msra.mxu0 0.0
  %44 = vmatprep.subr.mxu0 0.0
  %45 = vmatpush1.msra.mxu0 0.0
  %46 = vmatprep.subr.mxu0 0.0
  %47 = vmatpush1.msra.mxu0 0.0
  %48 = vmatprep.subr.mxu0 0.0
  %49 = vmatpush1.msra.mxu0 0.0
  %50 = vmatprep.subr.mxu0 0.0
  %51 = vmatpush1.msra.mxu0 0.0
  %52 = vmatprep.subr.mxu0 0.0
  %53 = vmatpush1.msra.mxu0 0.0
  %54 = vmatprep.subr.mxu0 0.0
  %55 = vmatpush1.msra.mxu0 0.0
  %56 = vmatprep.subr.mxu0 0.0
  %57 = vmatpush1.msra.mxu0 0.0
  %58 = vmatprep.subr.mxu0 0.0
  %59 = vmatpush1.msra.mxu0 0.0
  %60 = vmatprep.subr.mxu0 0.0
  %61 = vmatpush1.msra.mxu0 0.0
  %62 = vmatprep.subr.mxu0 0.0
  %63 = vmatpush1.msra.mxu0 0.0
  %64 = vmatprep.subr.mxu0 0.0
  %65 = vmatpush1.msra.mxu0 0.0
  %66 = vmatprep.subr.mxu0 0.0
  %67 = vmatpush1.msra.mxu0 0.0
  %68 = vmatprep.subr.mxu0 0.0
  %69 = vmatpush1.msra.mxu0 0.0
  %70 = vmatprep.subr.mxu0 0.0
  %71 = vmatpush1.msra.mxu0 0.0
  %72 = vmatprep.subr.mxu0 0.0
  %73 = vmatpush1.msra.mxu0 0.0
  %74 = vmatprep.subr.mxu0 0.0
  %75 = vmatpush1.msra.mxu0 0.0
  %76 = vmatprep.subr.mxu0 0.0
  %77 = vmatpush1.msra.mxu0 0.0
  %78 = vmatprep.subr.mxu0 0.0
  %79 = vmatpush1.msra.mxu0 0.0
  %80 = vmatprep.subr.mxu0 0.0
  %81 = vmatpush1.msra.mxu0 0.0
  %82 = vmatprep.subr.mxu0 0.0
  %83 = vmatpush1.msra.mxu0 0.0
  %84 = vmatprep.subr.mxu0 0.0
  %85 = vmatpush1.msra.mxu0 0.0
  %86 = vmatprep.subr.mxu0 0.0
  %87 = vmatpush1.msra.mxu0 0.0
  %88 = vmatprep.subr.mxu0 0.0
  %89 = vmatpush1.msra.mxu0 0.0
  %90 = vmatprep.mubr.f32.mxu0 0.0
  %91 = vmatmul.mubr.f32.gmra.mrb[0].mxu0 %v24
  %v92 = vpop.f32.mrb[0].mxu0
  %v93 = vadd.f32 0.0, %v92
  %v94 = vpop.f32.mrb[0].mxu0
  %95 = vdwg.mxu0
  %v96 = vadd.f32 %v21, %v93
  %v97 = vxor.u32 %v96, 2147483648
  %v98 = vmul.f32 %v97, 1.442695
  %v99 = vpow.pop %v98
  %v100 = vadd.f32 %v99, 1.0
  %v101 = vrcp.pop %v100
  %v102 = vmul.f32 1.0, %v101
  %v103 = vtanh.pop %v96
  %v104 = vmul.f32 %v102, 0.0
  %106 = vrot.lane.b32.xlu0 %v103, 32
  %v107 = vpop.permute.xlu0 %106
  %v109 = vmul.f32 %v102, %v107
  %111 = vrot.lane.b32.xlu0 %v109, 32
  %v112 = vpop.permute.xlu0 %111
  %v114 = vadd.f32 %v104, %v112
  %v115 = vtanh.pop %v114
  %117 = vrot.lane.b32.xlu0 %v115, 32
  %v118 = vpop.permute.xlu0 %117
  %v120 = vmul.f32 %v102, %v118
  %s121 = scalar_lea.vmem %s0, 8
  %v122 = vld [vmem:[%s121] sm:$0xff]
  %124 = vrot.lane.b32.xlu0 %v120, 64
  %v125 = vpop.permute.xlu0 %124
  %v126 = vsel %vm22, %v125, 0
  %128 = vmatprep.subr.mxu0 0.0
  %129 = vmatpush1.msra.mxu0 %v17
  %130 = vmatprep.subr.mxu0 0.0
  %131 = vmatpush1.msra.mxu0 %v18
  %132 = vmatprep.subr.mxu0 0.0
  %133 = vmatpush1.msra.mxu0 %v19
  %134 = vmatprep.subr.mxu0 0.0
  %135 = vmatpush1.msra.mxu0 %v20
  %136 = vmatprep.subr.mxu0 0.0
  %137 = vmatpush1.msra.mxu0 0.0
  %138 = vmatprep.subr.mxu0 0.0
  %139 = vmatpush1.msra.mxu0 0.0
  %140 = vmatprep.subr.mxu0 0.0
  %141 = vmatpush1.msra.mxu0 0.0
  %142 = vmatprep.subr.mxu0 0.0
  %143 = vmatpush1.msra.mxu0 0.0
  %144 = vmatprep.subr.mxu0 0.0
  %145 = vmatpush1.msra.mxu0 0.0
  %146 = vmatprep.subr.mxu0 0.0
  %147 = vmatpush1.msra.mxu0 0.0
  %148 = vmatprep.subr.mxu0 0.0
  %149 = vmatpush1.msra.mxu0 0.0
  %150 = vmatprep.subr.mxu0 0.0
  %151 = vmatpush1.msra.mxu0 0.0
  %152 = vmatprep.subr.mxu0 0.0
  %153 = vmatpush1.msra.mxu0 0.0
  %154 = vmatprep.subr.mxu0 0.0
  %155 = vmatpush1.msra.mxu0 0.0
  %156 = vmatprep.subr.mxu0 0.0
  %157 = vmatpush1.msra.mxu0 0.0
  %158 = vmatprep.subr.mxu0 0.0
  %159 = vmatpush1.msra.mxu0 0.0
  %160 = vmatprep.subr.mxu0 0.0
  %161 = vmatpush1.msra.mxu0 0.0
  %162 = vmatprep.subr.mxu0 0.0
  %163 = vmatpush1.msra.mxu0 0.0
  %164 = vmatprep.subr.mxu0 0.0
  %165 = vmatpush1.msra.mxu0 0.0
  %166 = vmatprep.subr.mxu0 0.0
  %167 = vmatpush1.msra.mxu0 0.0
  %168 = vmatprep.subr.mxu0 0.0
  %169 = vmatpush1.msra.mxu0 0.0
  %170 = vmatprep.subr.mxu0 0.0
  %171 = vmatpush1.msra.mxu0 0.0
  %172 = vmatprep.subr.mxu0 0.0
  %173 = vmatpush1.msra.mxu0 0.0
  %174 = vmatprep.subr.mxu0 0.0
  %175 = vmatpush1.msra.mxu0 0.0
  %176 = vmatprep.subr.mxu0 0.0
  %177 = vmatpush1.msra.mxu0 0.0
  %178 = vmatprep.subr.mxu0 0.0
  %179 = vmatpush1.msra.mxu0 0.0
  %180 = vmatprep.subr.mxu0 0.0
  %181 = vmatpush1.msra.mxu0 0.0
  %182 = vmatprep.subr.mxu0 0.0
  %183 = vmatpush1.msra.mxu0 0.0
  %184 = vmatprep.subr.mxu0 0.0
  %185 = vmatpush1.msra.mxu0 0.0
  %186 = vmatprep.subr.mxu0 0.0
  %187 = vmatpush1.msra.mxu0 0.0
  %188 = vmatprep.subr.mxu0 0.0
  %189 = vmatpush1.msra.mxu0 0.0
  %190 = vmatprep.subr.mxu0 0.0
  %191 = vmatpush1.msra.mxu0 0.0
  %192 = vmatprep.mubr.f32.mxu0 0.0
  %193 = vmatmul.mubr.f32.gmra.mrb[0].mxu0 %v126
  %v194 = vpop.f32.mrb[0].mxu0
  %v195 = vadd.f32 0.0, %v194
  %v196 = vpop.f32.mrb[0].mxu0
  %197 = vdwg.mxu0
  %v198 = vadd.f32 %v122, %v195
  %v199 = vxor.u32 %v198, 2147483648
  %v200 = vmul.f32 %v199, 1.442695
  %v201 = vpow.pop %v200
  %v202 = vadd.f32 %v201, 1.0
  %v203 = vrcp.pop %v202
  %v204 = vmul.f32 1.0, %v203
  %v205 = vtanh.pop %v198
  %v206 = vmul.f32 %v204, %v114
  %208 = vrot.lane.b32.xlu0 %v205, 32
  %v209 = vpop.permute.xlu0 %208
  %v211 = vmul.f32 %v204, %v209
  %213 = vrot.lane.b32.xlu0 %v211, 32
  %v214 = vpop.permute.xlu0 %213
  %v216 = vadd.f32 %v206, %v214
  %v217 = vtanh.pop %v216
  %219 = vrot.lane.b32.xlu0 %v217, 32
  %v220 = vpop.permute.xlu0 %219
  %v222 = vmul.f32 %v204, %v220
  %s223 = scalar_lea.vmem %s0, 16
  %v224 = vld [vmem:[%s223] sm:$0xff]
  %226 = vrot.lane.b32.xlu0 %v222, 64
  %v227 = vpop.permute.xlu0 %226
  %v228 = vsel %vm22, %v227, 0
  %230 = vmatprep.subr.mxu0 0.0
  %231 = vmatpush1.msra.mxu0 %v17
  %232 = vmatprep.subr.mxu0 0.0
  %233 = vmatpush1.msra.mxu0 %v18
  %234 = vmatprep.subr.mxu0 0.0
  %235 = vmatpush1.msra.mxu0 %v19
  %236 = vmatprep.subr.mxu0 0.0
  %237 = vmatpush1.msra.mxu0 %v20
  %238 = vmatprep.subr.mxu0 0.0
  %239 = vmatpush1.msra.mxu0 0.0
  %240 = vmatprep.subr.mxu0 0.0
  %241 = vmatpush1.msra.mxu0 0.0
  %242 = vmatprep.subr.mxu0 0.0
  %243 = vmatpush1.msra.mxu0 0.0
  %244 = vmatprep.subr.mxu0 0.0
  %245 = vmatpush1.msra.mxu0 0.0
  %246 = vmatprep.subr.mxu0 0.0
  %247 = vmatpush1.msra.mxu0 0.0
  %248 = vmatprep.subr.mxu0 0.0
  %249 = vmatpush1.msra.mxu0 0.0
  %250 = vmatprep.subr.mxu0 0.0
  %251 = vmatpush1.msra.mxu0 0.0
  %252 = vmatprep.subr.mxu0 0.0
  %253 = vmatpush1.msra.mxu0 0.0
  %254 = vmatprep.subr.mxu0 0.0
  %255 = vmatpush1.msra.mxu0 0.0
  %256 = vmatprep.subr.mxu0 0.0
  %257 = vmatpush1.msra.mxu0 0.0
  %258 = vmatprep.subr.mxu0 0.0
  %259 = vmatpush1.msra.mxu0 0.0
  %260 = vmatprep.subr.mxu0 0.0
  %261 = vmatpush1.msra.mxu0 0.0
  %262 = vmatprep.subr.mxu0 0.0
  %263 = vmatpush1.msra.mxu0 0.0
  %264 = vmatprep.subr.mxu0 0.0
  %265 = vmatpush1.msra.mxu0 0.0
  %266 = vmatprep.subr.mxu0 0.0
  %267 = vmatpush1.msra.mxu0 0.0
  %268 = vmatprep.subr.mxu0 0.0
  %269 = vmatpush1.msra.mxu0 0.0
  %270 = vmatprep.subr.mxu0 0.0
  %271 = vmatpush1.msra.mxu0 0.0
  %272 = vmatprep.subr.mxu0 0.0
  %273 = vmatpush1.msra.mxu0 0.0
  %274 = vmatprep.subr.mxu0 0.0
  %275 = vmatpush1.msra.mxu0 0.0
  %276 = vmatprep.subr.mxu0 0.0
  %277 = vmatpush1.msra.mxu0 0.0
  %278 = vmatprep.subr.mxu0 0.0
  %279 = vmatpush1.msra.mxu0 0.0
  %280 = vmatprep.subr.mxu0 0.0
  %281 = vmatpush1.msra.mxu0 0.0
  %282 = vmatprep.subr.mxu0 0.0
  %283 = vmatpush1.msra.mxu0 0.0
  %284 = vmatprep.subr.mxu0 0.0
  %285 = vmatpush1.msra.mxu0 0.0
  %286 = vmatprep.subr.mxu0 0.0
  %287 = vmatpush1.msra.mxu0 0.0
  %288 = vmatprep.subr.mxu0 0.0
  %289 = vmatpush1.msra.mxu0 0.0
  %290 = vmatprep.subr.mxu0 0.0
  %291 = vmatpush1.msra.mxu0 0.0
  %292 = vmatprep.subr.mxu0 0.0
  %293 = vmatpush1.msra.mxu0 0.0
  %294 = vmatprep.mubr.f32.mxu0 0.0
  %295 = vmatmul.mubr.f32.gmra.mrb[0].mxu0 %v228
  %v296 = vpop.f32.mrb[0].mxu0
  %v297 = vadd.f32 0.0, %v296
  %v298 = vpop.f32.mrb[0].mxu0
  %299 = vdwg.mxu0
  %v300 = vadd.f32 %v224, %v297
  %v301 = vxor.u32 %v300, 2147483648
  %v302 = vmul.f32 %v301, 1.442695
  %v303 = vpow.pop %v302
  %v304 = vadd.f32 %v303, 1.0
  %v305 = vrcp.pop %v304
  %v306 = vmul.f32 1.0, %v305
  %v307 = vtanh.pop %v300
  %v308 = vmul.f32 %v306, %v216
  %310 = vrot.lane.b32.xlu0 %v307, 32
  %v311 = vpop.permute.xlu0 %310
  %v313 = vmul.f32 %v306, %v311
  %315 = vrot.lane.b32.xlu0 %v313, 32
  %v316 = vpop.permute.xlu0 %315
  %v318 = vadd.f32 %v308, %v316
  %v319 = vtanh.pop %v318
  %321 = vrot.lane.b32.xlu0 %v319, 32
  %v322 = vpop.permute.xlu0 %321
  %v324 = vmul.f32 %v306, %v322
  %s325 = scalar_lea.vmem %s0, 24
  %v326 = vld [vmem:[%s325] sm:$0xff]
  %328 = vrot.lane.b32.xlu0 %v324, 64
  %v329 = vpop.permute.xlu0 %328
  %v330 = vsel %vm22, %v329, 0
  %332 = vmatprep.subr.mxu0 0.0
  %333 = vmatpush1.msra.mxu0 %v17
  %334 = vmatprep.subr.mxu0 0.0
  %335 = vmatpush1.msra.mxu0 %v18
  %336 = vmatprep.subr.mxu0 0.0
  %337 = vmatpush1.msra.mxu0 %v19
  %338 = vmatprep.subr.mxu0 0.0
  %339 = vmatpush1.msra.mxu0 %v20
  %340 = vmatprep.subr.mxu0 0.0
  %341 = vmatpush1.msra.mxu0 0.0
  %342 = vmatprep.subr.mxu0 0.0
  %343 = vmatpush1.msra.mxu0 0.0
  %344 = vmatprep.subr.mxu0 0.0
  %345 = vmatpush1.msra.mxu0 0.0
  %346 = vmatprep.subr.mxu0 0.0
  %347 = vmatpush1.msra.mxu0 0.0
  %348 = vmatprep.subr.mxu0 0.0
  %349 = vmatpush1.msra.mxu0 0.0
  %350 = vmatprep.subr.mxu0 0.0
  %351 = vmatpush1.msra.mxu0 0.0
  %352 = vmatprep.subr.mxu0 0.0
  %353 = vmatpush1.msra.mxu0 0.0
  %354 = vmatprep.subr.mxu0 0.0
  %355 = vmatpush1.msra.mxu0 0.0
  %356 = vmatprep.subr.mxu0 0.0
  %357 = vmatpush1.msra.mxu0 0.0
  %358 = vmatprep.subr.mxu0 0.0
  %359 = vmatpush1.msra.mxu0 0.0
  %360 = vmatprep.subr.mxu0 0.0
  %361 = vmatpush1.msra.mxu0 0.0
  %362 = vmatprep.subr.mxu0 0.0
  %363 = vmatpush1.msra.mxu0 0.0
  %364 = vmatprep.subr.mxu0 0.0
  %365 = vmatpush1.msra.mxu0 0.0
  %366 = vmatprep.subr.mxu0 0.0
  %367 = vmatpush1.msra.mxu0 0.0
  %368 = vmatprep.subr.mxu0 0.0
  %369 = vmatpush1.msra.mxu0 0.0
  %370 = vmatprep.subr.mxu0 0.0
  %371 = vmatpush1.msra.mxu0 0.0
  %372 = vmatprep.subr.mxu0 0.0
  %373 = vmatpush1.msra.mxu0 0.0
  %374 = vmatprep.subr.mxu0 0.0
  %375 = vmatpush1.msra.mxu0 0.0
  %376 = vmatprep.subr.mxu0 0.0
  %377 = vmatpush1.msra.mxu0 0.0
  %378 = vmatprep.subr.mxu0 0.0
  %379 = vmatpush1.msra.mxu0 0.0
  %380 = vmatprep.subr.mxu0 0.0
  %381 = vmatpush1.msra.mxu0 0.0
  %382 = vmatprep.subr.mxu0 0.0
  %383 = vmatpush1.msra.mxu0 0.0
  %384 = vmatprep.subr.mxu0 0.0
  %385 = vmatpush1.msra.mxu0 0.0
  %386 = vmatprep.subr.mxu0 0.0
  %387 = vmatpush1.msra.mxu0 0.0
  %388 = vmatprep.subr.mxu0 0.0
  %389 = vmatpush1.msra.mxu0 0.0
  %390 = vmatprep.subr.mxu0 0.0
  %391 = vmatpush1.msra.mxu0 0.0
  %392 = vmatprep.subr.mxu0 0.0
  %393 = vmatpush1.msra.mxu0 0.0
  %394 = vmatprep.subr.mxu0 0.0
  %395 = vmatpush1.msra.mxu0 0.0
  %396 = vmatprep.mubr.f32.mxu0 0.0
  %397 = vmatmul.mubr.f32.gmra.mrb[0].mxu0 %v330
  %v398 = vpop.f32.mrb[0].mxu0
  %v399 = vadd.f32 0.0, %v398
  %v400 = vpop.f32.mrb[0].mxu0
  %401 = vdwg.mxu0
  %v402 = vadd.f32 %v326, %v399
  %v403 = vxor.u32 %v402, 2147483648
  %v404 = vmul.f32 %v403, 1.442695
  %v405 = vpow.pop %v404
  %v406 = vadd.f32 %v405, 1.0
  %v407 = vrcp.pop %v406
  %v408 = vmul.f32 1.0, %v407
  %v409 = vtanh.pop %v402
  %v410 = vmul.f32 %v408, %v318
  %412 = vrot.lane.b32.xlu0 %v409, 32
  %v413 = vpop.permute.xlu0 %412
  %v415 = vmul.f32 %v408, %v413
  %417 = vrot.lane.b32.xlu0 %v415, 32
  %v418 = vpop.permute.xlu0 %417
  %v420 = vadd.f32 %v410, %v418
  %v421 = vtanh.pop %v420
  %423 = vrot.lane.b32.xlu0 %v421, 32
  %v424 = vpop.permute.xlu0 %423
  %v426 = vmul.f32 %v408, %v424
  %s427 = scalar_lea.vmem %s0, 32
  %v428 = vld [vmem:[%s427] sm:$0xff]
  %430 = vrot.lane.b32.xlu0 %v426, 64
  %v431 = vpop.permute.xlu0 %430
  %v432 = vsel %vm22, %v431, 0
  %434 = vmatprep.subr.mxu0 0.0
  %435 = vmatpush1.msra.mxu0 %v17
  %436 = vmatprep.subr.mxu0 0.0
  %437 = vmatpush1.msra.mxu0 %v18
  %438 = vmatprep.subr.mxu0 0.0
  %439 = vmatpush1.msra.mxu0 %v19
  %440 = vmatprep.subr.mxu0 0.0
  %441 = vmatpush1.msra.mxu0 %v20
  %442 = vmatprep.subr.mxu0 0.0
  %443 = vmatpush1.msra.mxu0 0.0
  %444 = vmatprep.subr.mxu0 0.0
  %445 = vmatpush1.msra.mxu0 0.0
  %446 = vmatprep.subr.mxu0 0.0
  %447 = vmatpush1.msra.mxu0 0.0
  %448 = vmatprep.subr.mxu0 0.0
  %449 = vmatpush1.msra.mxu0 0.0
  %450 = vmatprep.subr.mxu0 0.0
  %451 = vmatpush1.msra.mxu0 0.0
  %452 = vmatprep.subr.mxu0 0.0
  %453 = vmatpush1.msra.mxu0 0.0
  %454 = vmatprep.subr.mxu0 0.0
  %455 = vmatpush1.msra.mxu0 0.0
  %456 = vmatprep.subr.mxu0 0.0
  %457 = vmatpush1.msra.mxu0 0.0
  %458 = vmatprep.subr.mxu0 0.0
  %459 = vmatpush1.msra.mxu0 0.0
  %460 = vmatprep.subr.mxu0 0.0
  %461 = vmatpush1.msra.mxu0 0.0
  %462 = vmatprep.subr.mxu0 0.0
  %463 = vmatpush1.msra.mxu0 0.0
  %464 = vmatprep.subr.mxu0 0.0
  %465 = vmatpush1.msra.mxu0 0.0
  %466 = vmatprep.subr.mxu0 0.0
  %467 = vmatpush1.msra.mxu0 0.0
  %468 = vmatprep.subr.mxu0 0.0
  %469 = vmatpush1.msra.mxu0 0.0
  %470 = vmatprep.subr.mxu0 0.0
  %471 = vmatpush1.msra.mxu0 0.0
  %472 = vmatprep.subr.mxu0 0.0
  %473 = vmatpush1.msra.mxu0 0.0
  %474 = vmatprep.subr.mxu0 0.0
  %475 = vmatpush1.msra.mxu0 0.0
  %476 = vmatprep.subr.mxu0 0.0
  %477 = vmatpush1.msra.mxu0 0.0
  %478 = vmatprep.subr.mxu0 0.0
  %479 = vmatpush1.msra.mxu0 0.0
  %480 = vmatprep.subr.mxu0 0.0
  %481 = vmatpush1.msra.mxu0 0.0
  %482 = vmatprep.subr.mxu0 0.0
  %483 = vmatpush1.msra.mxu0 0.0
  %484 = vmatprep.subr.mxu0 0.0
  %485 = vmatpush1.msra.mxu0 0.0
  %486 = vmatprep.subr.mxu0 0.0
  %487 = vmatpush1.msra.mxu0 0.0
  %488 = vmatprep.subr.mxu0 0.0
  %489 = vmatpush1.msra.mxu0 0.0
  %490 = vmatprep.subr.mxu0 0.0
  %491 = vmatpush1.msra.mxu0 0.0
  %492 = vmatprep.subr.mxu0 0.0
  %493 = vmatpush1.msra.mxu0 0.0
  %494 = vmatprep.subr.mxu0 0.0
  %495 = vmatpush1.msra.mxu0 0.0
  %496 = vmatprep.subr.mxu0 0.0
  %497 = vmatpush1.msra.mxu0 0.0
  %498 = vmatprep.mubr.f32.mxu0 0.0
  %499 = vmatmul.mubr.f32.gmra.mrb[0].mxu0 %v432
  %v500 = vpop.f32.mrb[0].mxu0
  %v501 = vadd.f32 0.0, %v500
  %v502 = vpop.f32.mrb[0].mxu0
  %503 = vdwg.mxu0
  %v504 = vadd.f32 %v428, %v501
  %v505 = vxor.u32 %v504, 2147483648
  %v506 = vmul.f32 %v505, 1.442695
  %v507 = vpow.pop %v506
  %v508 = vadd.f32 %v507, 1.0
  %v509 = vrcp.pop %v508
  %v510 = vmul.f32 1.0, %v509
  %v511 = vtanh.pop %v504
  %v512 = vmul.f32 %v510, %v420
  %514 = vrot.lane.b32.xlu0 %v511, 32
  %v515 = vpop.permute.xlu0 %514
  %v517 = vmul.f32 %v510, %v515
  %519 = vrot.lane.b32.xlu0 %v517, 32
  %v520 = vpop.permute.xlu0 %519
  %v522 = vadd.f32 %v512, %v520
  %v523 = vtanh.pop %v522
  %525 = vrot.lane.b32.xlu0 %v523, 32
  %v526 = vpop.permute.xlu0 %525
  %v528 = vmul.f32 %v510, %v526
  %s529 = scalar_lea.vmem %s0, 40
  %v530 = vld [vmem:[%s529] sm:$0xff]
  %532 = vrot.lane.b32.xlu0 %v528, 64
  %v533 = vpop.permute.xlu0 %532
  %v534 = vsel %vm22, %v533, 0
  %536 = vmatprep.subr.mxu0 0.0
  %537 = vmatpush1.msra.mxu0 %v17
  %538 = vmatprep.subr.mxu0 0.0
  %539 = vmatpush1.msra.mxu0 %v18
  %540 = vmatprep.subr.mxu0 0.0
  %541 = vmatpush1.msra.mxu0 %v19
  %542 = vmatprep.subr.mxu0 0.0
  %543 = vmatpush1.msra.mxu0 %v20
  %544 = vmatprep.subr.mxu0 0.0
  %545 = vmatpush1.msra.mxu0 0.0
  %546 = vmatprep.subr.mxu0 0.0
  %547 = vmatpush1.msra.mxu0 0.0
  %548 = vmatprep.subr.mxu0 0.0
  %549 = vmatpush1.msra.mxu0 0.0
  %550 = vmatprep.subr.mxu0 0.0
  %551 = vmatpush1.msra.mxu0 0.0
  %552 = vmatprep.subr.mxu0 0.0
  %553 = vmatpush1.msra.mxu0 0.0
  %554 = vmatprep.subr.mxu0 0.0
  %555 = vmatpush1.msra.mxu0 0.0
  %556 = vmatprep.subr.mxu0 0.0
  %557 = vmatpush1.msra.mxu0 0.0
  %558 = vmatprep.subr.mxu0 0.0
  %559 = vmatpush1.msra.mxu0 0.0
  %560 = vmatprep.subr.mxu0 0.0
  %561 = vmatpush1.msra.mxu0 0.0
  %562 = vmatprep.subr.mxu0 0.0
  %563 = vmatpush1.msra.mxu0 0.0
  %564 = vmatprep.subr.mxu0 0.0
  %565 = vmatpush1.msra.mxu0 0.0
  %566 = vmatprep.subr.mxu0 0.0
  %567 = vmatpush1.msra.mxu0 0.0
  %568 = vmatprep.subr.mxu0 0.0
  %569 = vmatpush1.msra.mxu0 0.0
  %570 = vmatprep.subr.mxu0 0.0
  %571 = vmatpush1.msra.mxu0 0.0
  %572 = vmatprep.subr.mxu0 0.0
  %573 = vmatpush1.msra.mxu0 0.0
  %574 = vmatprep.subr.mxu0 0.0
  %575 = vmatpush1.msra.mxu0 0.0
  %576 = vmatprep.subr.mxu0 0.0
  %577 = vmatpush1.msra.mxu0 0.0
  %578 = vmatprep.subr.mxu0 0.0
  %579 = vmatpush1.msra.mxu0 0.0
  %580 = vmatprep.subr.mxu0 0.0
  %581 = vmatpush1.msra.mxu0 0.0
  %582 = vmatprep.subr.mxu0 0.0
  %583 = vmatpush1.msra.mxu0 0.0
  %584 = vmatprep.subr.mxu0 0.0
  %585 = vmatpush1.msra.mxu0 0.0
  %586 = vmatprep.subr.mxu0 0.0
  %587 = vmatpush1.msra.mxu0 0.0
  %588 = vmatprep.subr.mxu0 0.0
  %589 = vmatpush1.msra.mxu0 0.0
  %590 = vmatprep.subr.mxu0 0.0
  %591 = vmatpush1.msra.mxu0 0.0
  %592 = vmatprep.subr.mxu0 0.0
  %593 = vmatpush1.msra.mxu0 0.0
  %594 = vmatprep.subr.mxu0 0.0
  %595 = vmatpush1.msra.mxu0 0.0
  %596 = vmatprep.subr.mxu0 0.0
  %597 = vmatpush1.msra.mxu0 0.0
  %598 = vmatprep.subr.mxu0 0.0
  %599 = vmatpush1.msra.mxu0 0.0
  %600 = vmatprep.mubr.f32.mxu0 0.0
  %601 = vmatmul.mubr.f32.gmra.mrb[0].mxu0 %v534
  %v602 = vpop.f32.mrb[0].mxu0
  %v603 = vadd.f32 0.0, %v602
  %v604 = vpop.f32.mrb[0].mxu0
  %605 = vdwg.mxu0
  %v606 = vadd.f32 %v530, %v603
  %v607 = vxor.u32 %v606, 2147483648
  %v608 = vmul.f32 %v607, 1.442695
  %v609 = vpow.pop %v608
  %v610 = vadd.f32 %v609, 1.0
  %v611 = vrcp.pop %v610
  %v612 = vmul.f32 1.0, %v611
  %v613 = vtanh.pop %v606
  %v614 = vmul.f32 %v612, %v522
  %616 = vrot.lane.b32.xlu0 %v613, 32
  %v617 = vpop.permute.xlu0 %616
  %v619 = vmul.f32 %v612, %v617
  %621 = vrot.lane.b32.xlu0 %v619, 32
  %v622 = vpop.permute.xlu0 %621
  %v624 = vadd.f32 %v614, %v622
  %v625 = vtanh.pop %v624
  %627 = vrot.lane.b32.xlu0 %v625, 32
  %v628 = vpop.permute.xlu0 %627
  %v630 = vmul.f32 %v612, %v628
  %s631 = scalar_lea.vmem %s0, 48
  %v632 = vld [vmem:[%s631] sm:$0xff]
  %634 = vrot.lane.b32.xlu0 %v630, 64
  %v635 = vpop.permute.xlu0 %634
  %v636 = vsel %vm22, %v635, 0
  %638 = vmatprep.subr.mxu0 0.0
  %639 = vmatpush1.msra.mxu0 %v17
  %640 = vmatprep.subr.mxu0 0.0
  %641 = vmatpush1.msra.mxu0 %v18
  %642 = vmatprep.subr.mxu0 0.0
  %643 = vmatpush1.msra.mxu0 %v19
  %644 = vmatprep.subr.mxu0 0.0
  %645 = vmatpush1.msra.mxu0 %v20
  %646 = vmatprep.subr.mxu0 0.0
  %647 = vmatpush1.msra.mxu0 0.0
  %648 = vmatprep.subr.mxu0 0.0
  %649 = vmatpush1.msra.mxu0 0.0
  %650 = vmatprep.subr.mxu0 0.0
  %651 = vmatpush1.msra.mxu0 0.0
  %652 = vmatprep.subr.mxu0 0.0
  %653 = vmatpush1.msra.mxu0 0.0
  %654 = vmatprep.subr.mxu0 0.0
  %655 = vmatpush1.msra.mxu0 0.0
  %656 = vmatprep.subr.mxu0 0.0
  %657 = vmatpush1.msra.mxu0 0.0
  %658 = vmatprep.subr.mxu0 0.0
  %659 = vmatpush1.msra.mxu0 0.0
  %660 = vmatprep.subr.mxu0 0.0
  %661 = vmatpush1.msra.mxu0 0.0
  %662 = vmatprep.subr.mxu0 0.0
  %663 = vmatpush1.msra.mxu0 0.0
  %664 = vmatprep.subr.mxu0 0.0
  %665 = vmatpush1.msra.mxu0 0.0
  %666 = vmatprep.subr.mxu0 0.0
  %667 = vmatpush1.msra.mxu0 0.0
  %668 = vmatprep.subr.mxu0 0.0
  %669 = vmatpush1.msra.mxu0 0.0
  %670 = vmatprep.subr.mxu0 0.0
  %671 = vmatpush1.msra.mxu0 0.0
  %672 = vmatprep.subr.mxu0 0.0
  %673 = vmatpush1.msra.mxu0 0.0
  %674 = vmatprep.subr.mxu0 0.0
  %675 = vmatpush1.msra.mxu0 0.0
  %676 = vmatprep.subr.mxu0 0.0
  %677 = vmatpush1.msra.mxu0 0.0
  %678 = vmatprep.subr.mxu0 0.0
  %679 = vmatpush1.msra.mxu0 0.0
  %680 = vmatprep.subr.mxu0 0.0
  %681 = vmatpush1.msra.mxu0 0.0
  %682 = vmatprep.subr.mxu0 0.0
  %683 = vmatpush1.msra.mxu0 0.0
  %684 = vmatprep.subr.mxu0 0.0
  %685 = vmatpush1.msra.mxu0 0.0
  %686 = vmatprep.subr.mxu0 0.0
  %687 = vmatpush1.msra.mxu0 0.0
  %688 = vmatprep.subr.mxu0 0.0
  %689 = vmatpush1.msra.mxu0 0.0
  %690 = vmatprep.subr.mxu0 0.0
  %691 = vmatpush1.msra.mxu0 0.0
  %692 = vmatprep.subr.mxu0 0.0
  %693 = vmatpush1.msra.mxu0 0.0
  %694 = vmatprep.subr.mxu0 0.0
  %695 = vmatpush1.msra.mxu0 0.0
  %696 = vmatprep.subr.mxu0 0.0
  %697 = vmatpush1.msra.mxu0 0.0
  %698 = vmatprep.subr.mxu0 0.0
  %699 = vmatpush1.msra.mxu0 0.0
  %700 = vmatprep.subr.mxu0 0.0
  %701 = vmatpush1.msra.mxu0 0.0
  %702 = vmatprep.mubr.f32.mxu0 0.0
  %703 = vmatmul.mubr.f32.gmra.mrb[0].mxu0 %v636
  %v704 = vpop.f32.mrb[0].mxu0
  %v705 = vadd.f32 0.0, %v704
  %v706 = vpop.f32.mrb[0].mxu0
  %707 = vdwg.mxu0
  %v708 = vadd.f32 %v632, %v705
  %v709 = vxor.u32 %v708, 2147483648
  %v710 = vmul.f32 %v709, 1.442695
  %v711 = vpow.pop %v710
  %v712 = vadd.f32 %v711, 1.0
  %v713 = vrcp.pop %v712
  %v714 = vmul.f32 1.0, %v713
  %v715 = vtanh.pop %v708
  %v716 = vmul.f32 %v714, %v624
  %718 = vrot.lane.b32.xlu0 %v715, 32
  %v719 = vpop.permute.xlu0 %718
  %v721 = vmul.f32 %v714, %v719
  %723 = vrot.lane.b32.xlu0 %v721, 32
  %v724 = vpop.permute.xlu0 %723
  %v726 = vadd.f32 %v716, %v724
  %v727 = vtanh.pop %v726
  %729 = vrot.lane.b32.xlu0 %v727, 32
  %v730 = vpop.permute.xlu0 %729
  %v732 = vmul.f32 %v714, %v730
  %s733 = scalar_lea.vmem %s0, 56
  %v734 = vld [vmem:[%s733] sm:$0xff]
  %736 = vrot.lane.b32.xlu0 %v732, 64
  %v737 = vpop.permute.xlu0 %736
  %v738 = vsel %vm22, %v737, 0
  %740 = vmatprep.subr.mxu0 0.0
  %741 = vmatpush1.msra.mxu0 %v17
  %742 = vmatprep.subr.mxu0 0.0
  %743 = vmatpush1.msra.mxu0 %v18
  %744 = vmatprep.subr.mxu0 0.0
  %745 = vmatpush1.msra.mxu0 %v19
  %746 = vmatprep.subr.mxu0 0.0
  %747 = vmatpush1.msra.mxu0 %v20
  %748 = vmatprep.subr.mxu0 0.0
  %749 = vmatpush1.msra.mxu0 0.0
  %750 = vmatprep.subr.mxu0 0.0
  %751 = vmatpush1.msra.mxu0 0.0
  %752 = vmatprep.subr.mxu0 0.0
  %753 = vmatpush1.msra.mxu0 0.0
  %754 = vmatprep.subr.mxu0 0.0
  %755 = vmatpush1.msra.mxu0 0.0
  %756 = vmatprep.subr.mxu0 0.0
  %757 = vmatpush1.msra.mxu0 0.0
  %758 = vmatprep.subr.mxu0 0.0
  %759 = vmatpush1.msra.mxu0 0.0
  %760 = vmatprep.subr.mxu0 0.0
  %761 = vmatpush1.msra.mxu0 0.0
  %762 = vmatprep.subr.mxu0 0.0
  %763 = vmatpush1.msra.mxu0 0.0
  %764 = vmatprep.subr.mxu0 0.0
  %765 = vmatpush1.msra.mxu0 0.0
  %766 = vmatprep.subr.mxu0 0.0
  %767 = vmatpush1.msra.mxu0 0.0
  %768 = vmatprep.subr.mxu0 0.0
  %769 = vmatpush1.msra.mxu0 0.0
  %770 = vmatprep.subr.mxu0 0.0
  %771 = vmatpush1.msra.mxu0 0.0
  %772 = vmatprep.subr.mxu0 0.0
  %773 = vmatpush1.msra.mxu0 0.0
  %774 = vmatprep.subr.mxu0 0.0
  %775 = vmatpush1.msra.mxu0 0.0
  %776 = vmatprep.subr.mxu0 0.0
  %777 = vmatpush1.msra.mxu0 0.0
  %778 = vmatprep.subr.mxu0 0.0
  %779 = vmatpush1.msra.mxu0 0.0
  %780 = vmatprep.subr.mxu0 0.0
  %781 = vmatpush1.msra.mxu0 0.0
  %782 = vmatprep.subr.mxu0 0.0
  %783 = vmatpush1.msra.mxu0 0.0
  %784 = vmatprep.subr.mxu0 0.0
  %785 = vmatpush1.msra.mxu0 0.0
  %786 = vmatprep.subr.mxu0 0.0
  %787 = vmatpush1.msra.mxu0 0.0
  %788 = vmatprep.subr.mxu0 0.0
  %789 = vmatpush1.msra.mxu0 0.0
  %790 = vmatprep.subr.mxu0 0.0
  %791 = vmatpush1.msra.mxu0 0.0
  %792 = vmatprep.subr.mxu0 0.0
  %793 = vmatpush1.msra.mxu0 0.0
  %794 = vmatprep.subr.mxu0 0.0
  %795 = vmatpush1.msra.mxu0 0.0
  %796 = vmatprep.subr.mxu0 0.0
  %797 = vmatpush1.msra.mxu0 0.0
  %798 = vmatprep.subr.mxu0 0.0
  %799 = vmatpush1.msra.mxu0 0.0
  %800 = vmatprep.subr.mxu0 0.0
  %801 = vmatpush1.msra.mxu0 0.0
  %802 = vmatprep.subr.mxu0 0.0
  %803 = vmatpush1.msra.mxu0 0.0
  %804 = vmatprep.mubr.f32.mxu0 0.0
  %805 = vmatmul.mubr.f32.gmra.mrb[0].mxu0 %v738
  %v806 = vpop.f32.mrb[0].mxu0
  %v807 = vadd.f32 0.0, %v806
  %v808 = vpop.f32.mrb[0].mxu0
  %809 = vdwg.mxu0
  %v810 = vadd.f32 %v734, %v807
  %v811 = vxor.u32 %v810, 2147483648
  %v812 = vmul.f32 %v811, 1.442695
  %v813 = vpow.pop %v812
  %v814 = vadd.f32 %v813, 1.0
  %v815 = vrcp.pop %v814
  %v816 = vmul.f32 1.0, %v815
  %v817 = vtanh.pop %v810
  %v818 = vmul.f32 %v816, %v726
  %820 = vrot.lane.b32.xlu0 %v817, 32
  %v821 = vpop.permute.xlu0 %820
  %v823 = vmul.f32 %v816, %v821
  %825 = vrot.lane.b32.xlu0 %v823, 32
  %v826 = vpop.permute.xlu0 %825
  %v828 = vadd.f32 %v818, %v826
  %v829 = vtanh.pop %v828
  %831 = vrot.lane.b32.xlu0 %v829, 32
  %v832 = vpop.permute.xlu0 %831
  %v834 = vmul.f32 %v816, %v832
  %v835 = vld [vmem:[%s2] sm:$0xff]
  %v836 = vld [vmem:[%s2 + $0x8] sm:$0xff]
  %v837 = vld [vmem:[%s2 + $0x10] sm:$0xff]
  %v838 = vld [vmem:[%s2 + $0x18] sm:$0xff]
  %v839 = vld [vmem:[%s3] sm:$0x1]
  %v841 = vlaneseq
  %v842 = vshrl.u32 %v841, 7
  %v843 = vsub.s32 0, %v842
  %v844 = vrot.slane %v839, %v843
  %847 = vrot.lane.b32.xlu0 %v834, 64
  %v848 = vpop.permute.xlu0 %847
  %v849 = vsel %vm22, %v848, 0
  %851 = vmatprep.subr.mxu0 0.0
  %852 = vmatpush1.msra.mxu0 %v835
  %853 = vmatprep.subr.mxu0 0.0
  %854 = vmatpush1.msra.mxu0 %v836
  %855 = vmatprep.subr.mxu0 0.0
  %856 = vmatpush1.msra.mxu0 %v837
  %857 = vmatprep.subr.mxu0 0.0
  %858 = vmatpush1.msra.mxu0 %v838
  %859 = vmatprep.subr.mxu0 0.0
  %860 = vmatpush1.msra.mxu0 0.0
  %861 = vmatprep.subr.mxu0 0.0
  %862 = vmatpush1.msra.mxu0 0.0
  %863 = vmatprep.subr.mxu0 0.0
  %864 = vmatpush1.msra.mxu0 0.0
  %865 = vmatprep.subr.mxu0 0.0
  %866 = vmatpush1.msra.mxu0 0.0
  %867 = vmatprep.subr.mxu0 0.0
  %868 = vmatpush1.msra.mxu0 0.0
  %869 = vmatprep.subr.mxu0 0.0
  %870 = vmatpush1.msra.mxu0 0.0
  %871 = vmatprep.subr.mxu0 0.0
  %872 = vmatpush1.msra.mxu0 0.0
  %873 = vmatprep.subr.mxu0 0.0
  %874 = vmatpush1.msra.mxu0 0.0
  %875 = vmatprep.subr.mxu0 0.0
  %876 = vmatpush1.msra.mxu0 0.0
  %877 = vmatprep.subr.mxu0 0.0
  %878 = vmatpush1.msra.mxu0 0.0
  %879 = vmatprep.subr.mxu0 0.0
  %880 = vmatpush1.msra.mxu0 0.0
  %881 = vmatprep.subr.mxu0 0.0
  %882 = vmatpush1.msra.mxu0 0.0
  %883 = vmatprep.subr.mxu0 0.0
  %884 = vmatpush1.msra.mxu0 0.0
  %885 = vmatprep.subr.mxu0 0.0
  %886 = vmatpush1.msra.mxu0 0.0
  %887 = vmatprep.subr.mxu0 0.0
  %888 = vmatpush1.msra.mxu0 0.0
  %889 = vmatprep.subr.mxu0 0.0
  %890 = vmatpush1.msra.mxu0 0.0
  %891 = vmatprep.subr.mxu0 0.0
  %892 = vmatpush1.msra.mxu0 0.0
  %893 = vmatprep.subr.mxu0 0.0
  %894 = vmatpush1.msra.mxu0 0.0
  %895 = vmatprep.subr.mxu0 0.0
  %896 = vmatpush1.msra.mxu0 0.0
  %897 = vmatprep.subr.mxu0 0.0
  %898 = vmatpush1.msra.mxu0 0.0
  %899 = vmatprep.subr.mxu0 0.0
  %900 = vmatpush1.msra.mxu0 0.0
  %901 = vmatprep.subr.mxu0 0.0
  %902 = vmatpush1.msra.mxu0 0.0
  %903 = vmatprep.subr.mxu0 0.0
  %904 = vmatpush1.msra.mxu0 0.0
  %905 = vmatprep.subr.mxu0 0.0
  %906 = vmatpush1.msra.mxu0 0.0
  %907 = vmatprep.subr.mxu0 0.0
  %908 = vmatpush1.msra.mxu0 0.0
  %909 = vmatprep.subr.mxu0 0.0
  %910 = vmatpush1.msra.mxu0 0.0
  %911 = vmatprep.subr.mxu0 0.0
  %912 = vmatpush1.msra.mxu0 0.0
  %913 = vmatprep.subr.mxu0 0.0
  %914 = vmatpush1.msra.mxu0 0.0
  %915 = vmatprep.mubr.f32.mxu0 0.0
  %916 = vmatmul.mubr.f32.gmra.mrb[0].mxu0 %v849
  %v917 = vpop.f32.mrb[0].mxu0
  %v918 = vadd.f32 %v844, %v917
  %v919 = vpop.f32.mrb[0].mxu0
  %920 = vdwg.mxu0
  %v921 = vxor.u32 %v918, 2147483648
  %v922 = vmul.f32 %v921, 1.442695
  %v923 = vpow.pop %v922
  %v924 = vadd.f32 %v923, 1.0
  %v925 = vrcp.pop %v924
  %v926 = vmul.f32 1.0, %v925
  %927 = vst [vmem:[%s4] sm:$0xff] %v926
  // Predicated region
  $region18: #{_lstm_forward.1} parent=0 // pred_check
    _
  $region19: #{_lstm_forward.1} parent=0 // pred_check_branch
    %929 = sbr.rel (0) target = $region21
  $region20: #{_lstm_forward.1} parent=0 // pred_region
    _
  $region21: #{_lstm_forward.1} parent=0 // pred_fallthru
    _
  // Predicated region
  $region22: #{_lstm_forward.1} parent=0 // pred_check
    _
  $region23: #{_lstm_forward.1} parent=0 // pred_check_branch
    %931 = sbr.rel (0) target = $region25
  $region24: #{_lstm_forward.1} parent=0 // pred_region
    _
  $region25: #{_lstm_forward.1} parent=0 // pred_fallthru
    _

</llo_original>
